<compile_context>
chip_gen: v7x
topology: tpu7x:2x2x1
jax: 0.10.0
libtpu: 0.0.40
codegen_flags: <defaults>
</compile_context>

<pallas_src>
import functools

import numpy as np
import jax
import jax.numpy as jnp
from jax.experimental import pallas as pl
from jax.experimental.pallas import tpu as pltpu


def _round_up(x, m):
    return ((x + m - 1) // m) * m


def _largest_aligned_divisor(dim, target, mult):
    """Largest multiple of `mult` that divides `dim` and is <= target.
    `dim` must itself be a multiple of `mult` (guaranteed by padding)."""
    t = (min(target, dim) // mult) * mult
    while t > mult:
        if dim % t == 0:
            return t
        t -= mult
    return mult


# ---------------------------------------------------------------------------
# Kernel 1: folded projections   a = x @ Wa' + ba',   b = x @ Wb' + bb'
#   x_ref : [1, TMS, H]    a_ref / b_ref : [1, TMS, L]
# ---------------------------------------------------------------------------
def _proj_kernel(x_ref, wa_ref, ba_ref, wb_ref, bb_ref, a_ref, b_ref):
    x = x_ref[0]                                                    # [TMS, H]
    a_ref[0] = (jnp.dot(x, wa_ref[...], preferred_element_type=jnp.float32)
                + ba_ref[...])
    b_ref[0] = (jnp.dot(x, wb_ref[...], preferred_element_type=jnp.float32)
                + bb_ref[...])


# ---------------------------------------------------------------------------
# Kernel 2: pairwise span grid + factorized softmax over labels
#   a_ref : [1, TI, L]   start-side contribution (span-start i on sublanes)
#   b_ref : [1, L, TJ]   end-side contribution   (span-end   j on lanes)
#   o_ref : [1, L, TI, TJ]  tile of the [B, L, S, S] probability grid
# ---------------------------------------------------------------------------
def _span_grid_kernel(L, TI, TJ, a_ref, b_ref, o_ref):
    i_blk = pl.program_id(1)
    j_blk = pl.program_id(2)

    # Tile entirely below the diagonal (every j < every i) is never gathered by
    # the wrapper; zero-fill it so the materialized grid holds no stale VMEM.
    @pl.when((j_blk + 1) * TJ <= i_blk * TI)
    def _zero():
        o_ref[...] = jnp.zeros_like(o_ref)

    @pl.when((j_blk + 1) * TJ > i_blk * TI)
    def _compute():
        a = a_ref[0]                                    # [TI, L]
        bt = b_ref[0]                                   # [L, TJ]
        # Row-wise stabilizers: m(i,j) = ma[i] + mb[j] >= true per-(i,j) max,
        # so every exp argument below is <= 0 (no overflow; underflow only if
        # the per-position logit spread across labels exceeds ~80 in f32).
        ma = a[:, 0:1]
        mb = bt[0:1, :]
        for l in range(1, L):
            ma = jnp.maximum(ma, a[:, l:l + 1])         # [TI, 1]
            mb = jnp.maximum(mb, bt[l:l + 1, :])        # [1, TJ]
        ea = jnp.exp(a - ma)                            # [TI, L]  (L*TI exps)
        eb = jnp.exp(bt - mb)                           # [L, TJ]  (L*TJ exps)
        # Softmax denominator for all (i, j) pairs in one MXU matmul.
        s = jnp.dot(ea, eb, preferred_element_type=jnp.float32)    # [TI, TJ]
        inv = pl.reciprocal(s, approx=True)             # EUP slot
        inv = inv * (2.0 - s * inv)                     # one Newton step
        # Each label plane is a rank-1 outer product scaled by 1/s.
        for l in range(L):
            o_ref[0, l, :, :] = (ea[:, l:l + 1] * eb[l:l + 1, :] * inv
                                 ).astype(o_ref.dtype)


@jax.jit
def span_classifier_forward(x, params):
    B, S, H = x.shape
    L = params["b_span"].shape[-1]

    # Exact algebraic folding of the start/end linears into the span head
    # (tiny [H,H]@[H,L] / [1,H]@[H,L] precompute; no nonlinearity in between).
    wa = params["w_start"] @ params["w_span_a"]                     # [H, L]
    ba = params["b_start"] @ params["w_span_a"]                     # [1, L]
    wb = params["w_end"] @ params["w_span_b"]                       # [H, L]
    bb = params["b_end"] @ params["w_span_b"] + params["b_span"]    # [1, L]

    # ---- tiling / padding --------------------------------------------------
    if S <= 128:
        S_pad = S                     # full-extent blocks are always legal
        TMS = TI = TJ = S
    else:
        S_pad = _round_up(S, 128)     # keeps every tile 8/128 aligned
        TMS = _largest_aligned_divisor(S_pad, 512, 128)   # projection rows
        TI = _largest_aligned_divisor(S_pad, 128, 8)      # sublane axis of out
        TJ = _largest_aligned_divisor(S_pad, 512, 128)    # lane axis of out

    x_pad = x if S_pad == S else jnp.pad(x, ((0, 0), (0, S_pad - S), (0, 0)))

    # ---- kernel 1: folded projections ---------------------------------------
    # VMEM/step ~ 2*TMS*H*4 (double-buffered x) + small; 48 MiB covers H<=4K.
    a3, b_nat = pl.pallas_call(
        _proj_kernel,
        out_shape=(jax.ShapeDtypeStruct((B, S_pad, L), jnp.float32),
                   jax.ShapeDtypeStruct((B, S_pad, L), jnp.float32)),
        grid=(B, S_pad // TMS),
        in_specs=[
            pl.BlockSpec((1, TMS, H), lambda b, s: (b, s, 0)),
            pl.BlockSpec((H, L), lambda b, s: (0, 0)),
            pl.BlockSpec((1, L), lambda b, s: (0, 0)),
            pl.BlockSpec((H, L), lambda b, s: (0, 0)),
            pl.BlockSpec((1, L), lambda b, s: (0, 0)),
        ],
        out_specs=(
            pl.BlockSpec((1, TMS, L), lambda b, s: (b, s, 0)),
            pl.BlockSpec((1, TMS, L), lambda b, s: (b, s, 0)),
        ),
        compiler_params=pltpu.CompilerParams(
            dimension_semantics=("parallel", "parallel"),
            vmem_limit_bytes=48 * 1024 * 1024),
    )(x_pad, wa, ba, wb, bb)

    # Layout plumbing on tiny O(B*S*L) data so kernel 2's broadcasts and stores
    # are lane-dense (span-end j on the 128-wide lane axis).
    b3 = jnp.transpose(b_nat, (0, 2, 1))                            # [B, L, S_pad]

    # ---- kernel 2: span grid + softmax --------------------------------------
    # VMEM/step ~ 2*L*TI*TJ*4 output buffers + a few [TI,TJ] temporaries
    # (~4 MB at L=5, TI=128, TJ=512) -> comfortably within 32 MiB on all chips.
    probs_full = pl.pallas_call(
        functools.partial(_span_grid_kernel, L, TI, TJ),
        out_shape=jax.ShapeDtypeStruct((B, L, S_pad, S_pad), jnp.float32),
        grid=(B, S_pad // TI, S_pad // TJ),
        in_specs=[
            pl.BlockSpec((1, TI, L), lambda b, i, j: (b, i, 0)),
            pl.BlockSpec((1, L, TJ), lambda b, i, j: (b, 0, j)),
        ],
        out_specs=pl.BlockSpec((1, L, TI, TJ), lambda b, i, j: (b, 0, i, j)),
        compiler_params=pltpu.CompilerParams(
            # Every step writes a disjoint output block -> all-parallel, so
            # v7x's two TensorCores can shard any axis (no accumulation axis).
            dimension_semantics=("parallel", "parallel", "parallel"),
            vmem_limit_bytes=32 * 1024 * 1024),
    )(a3, b3)

    # Gather spans (i, j) with i <= j in the PyTorch loop order (row-major
    # upper triangle) using a flat index so each (b, l, i) pulls a contiguous
    # run of probabilities -> [B, S*(S+1)/2, L].
    ii, jj = np.triu_indices(S)
    flat_idx = jnp.asarray(ii * S_pad + jj, dtype=jnp.int32)
    packed = jnp.take(probs_full.reshape(B, L, S_pad * S_pad), flat_idx, axis=2)
    return jnp.transpose(packed, (0, 2, 1))


def reference_forward(x, params):
    """Pure-JAX mirror of the PyTorch module for verification."""
    B, S, H = x.shape
    start = jnp.einsum("bsh,hk->bsk", x, params["w_start"]) + params["b_start"]
    end = jnp.einsum("bsh,hk->bsk", x, params["w_end"]) + params["b_end"]
    w_span = jnp.concatenate([params["w_span_a"], params["w_span_b"]], axis=0)
    spans = []
    for i in range(S):
        for j in range(i, S):
            v = jnp.concatenate([start[:, i, :], end[:, j, :]], axis=-1)
            spans.append(v @ w_span + params["b_span"][0])
    logits = jnp.stack(spans, axis=1)
    return jax.nn.softmax(logits, axis=-1)


if __name__ == "__main__":
    B, S, H, L = 2, 8, 32, 5  # batch, seq, hidden_size, num_labels

    key = jax.random.PRNGKey(0)
    keys = jax.random.split(key, 8)
    scale = 1.0 / jnp.sqrt(H).astype(jnp.float32)
    # Deterministic synthetic parameters (shapes from the module's __init__),
    # stored in [in, out] layout (i.e. already transposed vs torch's [out, in]).
    params = {
        "w_start": jax.random.normal(keys[0], (H, H), jnp.float32) * scale,
        "b_start": jax.random.normal(keys[1], (1, H), jnp.float32) * scale,
        "w_end":   jax.random.normal(keys[2], (H, H), jnp.float32) * scale,
        "b_end":   jax.random.normal(keys[3], (1, H), jnp.float32) * scale,
        "w_span_a": jax.random.normal(keys[4], (H, L), jnp.float32) * scale,
        "w_span_b": jax.random.normal(keys[5], (H, L), jnp.float32) * scale,
        "b_span":  jax.random.normal(keys[6], (1, L), jnp.float32) * scale,
    }
    x = jax.random.normal(keys[7], (B, S, H), jnp.float32)

    out = jax.block_until_ready(span_classifier_forward(x, params))

    n_spans = S * (S + 1) // 2
    assert out.shape == (B, n_spans, L), out.shape

    ref = reference_forward(x, params)
    # Tolerance covers the (algebraically exact) weight folding, the factorized
    # softmax stabilizer, and the Newton-refined approximate reciprocal.
    assert jnp.allclose(out, ref, atol=1e-3, rtol=1e-3), (
        float(jnp.max(jnp.abs(out - ref))))

    print("KERNEL_OK")
</pallas_src>

<mosaic_0001>
module attributes {stable_mosaic.version = 11 : i64} {
  func.func @_proj_kernel(%arg0: i32, %arg1: i32, %arg2: memref<1x8x32xf32, #tpu.memory_space<vmem>>, %arg3: memref<32x5xf32, #tpu.memory_space<vmem>>, %arg4: memref<1x5xf32, #tpu.memory_space<vmem>>, %arg5: memref<32x5xf32, #tpu.memory_space<vmem>>, %arg6: memref<1x5xf32, #tpu.memory_space<vmem>>, %arg7: memref<1x8x5xf32, #tpu.memory_space<vmem>>, %arg8: memref<1x8x5xf32, #tpu.memory_space<vmem>>) attributes {dimension_semantics = [#tpu.dimension_semantics<parallel>, #tpu.dimension_semantics<parallel>], iteration_bounds = array<i64: 2, 1>, scalar_prefetch = 0 : i64, scratch_operands = 0 : i64, tpu.core_type = #tpu.core_type<tc>, window_params = [{transform_indices = @transform_0, window_bounds = array<i64: 1, 8, 32>}, {pipeline_mode = #tpu.pipeline_mode<synchronous>, transform_indices = @transform_1, window_bounds = array<i64: 32, 5>}, {pipeline_mode = #tpu.pipeline_mode<synchronous>, transform_indices = @transform_2, window_bounds = array<i64: 1, 5>}, {pipeline_mode = #tpu.pipeline_mode<synchronous>, transform_indices = @transform_3, window_bounds = array<i64: 32, 5>}, {pipeline_mode = #tpu.pipeline_mode<synchronous>, transform_indices = @transform_4, window_bounds = array<i64: 1, 5>}, {transform_indices = @transform_5, window_bounds = array<i64: 1, 8, 5>}, {transform_indices = @transform_6, window_bounds = array<i64: 1, 8, 5>}]} {
    %c0 = arith.constant 0 : index
    %c0_0 = arith.constant 0 : index
    %c0_1 = arith.constant 0 : index
    %0 = vector.load %arg2[%c0, %c0_0, %c0_1] : memref<1x8x32xf32, #tpu.memory_space<vmem>>, vector<1x8x32xf32>
    %1 = vector.shape_cast %0 : vector<1x8x32xf32> to vector<8x32xf32>
    %c0_2 = arith.constant 0 : index
    %c0_3 = arith.constant 0 : index
    %2 = vector.load %arg3[%c0_2, %c0_3] : memref<32x5xf32, #tpu.memory_space<vmem>>, vector<32x5xf32>
    %cst = arith.constant dense<0.000000e+00> : vector<8x5xf32>
    %3 = tpu.matmul %1, %2, %cst {dimension_numbers = #tpu.dot_dimension_numbers<[1], [0], [0], [1], [0, 0, 1, 1], [], []>} : vector<8x32xf32>, vector<32x5xf32>, vector<8x5xf32> -> vector<8x5xf32>
    %c0_4 = arith.constant 0 : index
    %c0_5 = arith.constant 0 : index
    %4 = vector.load %arg4[%c0_4, %c0_5] : memref<1x5xf32, #tpu.memory_space<vmem>>, vector<1x5xf32>
    %5 = vector.broadcast %4 : vector<1x5xf32> to vector<8x5xf32>
    %6 = arith.addf %3, %5 : vector<8x5xf32>
    %c0_6 = arith.constant 0 : index
    %c0_7 = arith.constant 0 : index
    %c0_8 = arith.constant 0 : index
    %7 = vector.load %arg7[%c0_6, %c0_7, %c0_8] : memref<1x8x5xf32, #tpu.memory_space<vmem>>, vector<1x8x5xf32>
    %8 = vector.shape_cast %7 : vector<1x8x5xf32> to vector<8x5xf32>
    %9 = vector.shape_cast %6 : vector<8x5xf32> to vector<1x8x5xf32>
    tpu.vector_store %arg7[%c0_6, %c0_7, %c0_8], %9 {strides = array<i32>} : memref<1x8x5xf32, #tpu.memory_space<vmem>>, vector<1x8x5xf32>,
    %c0_9 = arith.constant 0 : index
    %c0_10 = arith.constant 0 : index
    %10 = vector.load %arg5[%c0_9, %c0_10] : memref<32x5xf32, #tpu.memory_space<vmem>>, vector<32x5xf32>
    %cst_11 = arith.constant dense<0.000000e+00> : vector<8x5xf32>
    %11 = tpu.matmul %1, %10, %cst_11 {dimension_numbers = #tpu.dot_dimension_numbers<[1], [0], [0], [1], [0, 0, 1, 1], [], []>} : vector<8x32xf32>, vector<32x5xf32>, vector<8x5xf32> -> vector<8x5xf32>
    %c0_12 = arith.constant 0 : index
    %c0_13 = arith.constant 0 : index
    %12 = vector.load %arg6[%c0_12, %c0_13] : memref<1x5xf32, #tpu.memory_space<vmem>>, vector<1x5xf32>
    %13 = vector.broadcast %12 : vector<1x5xf32> to vector<8x5xf32>
    %14 = arith.addf %11, %13 : vector<8x5xf32>
    %c0_14 = arith.constant 0 : index
    %c0_15 = arith.constant 0 : index
    %c0_16 = arith.constant 0 : index
    %15 = vector.load %arg8[%c0_14, %c0_15, %c0_16] : memref<1x8x5xf32, #tpu.memory_space<vmem>>, vector<1x8x5xf32>
    %16 = vector.shape_cast %15 : vector<1x8x5xf32> to vector<8x5xf32>
    %17 = vector.shape_cast %14 : vector<8x5xf32> to vector<1x8x5xf32>
    tpu.vector_store %arg8[%c0_14, %c0_15, %c0_16], %17 {strides = array<i32>} : memref<1x8x5xf32, #tpu.memory_space<vmem>>, vector<1x8x5xf32>,
    return
  }
  func.func @transform_0(%arg0: i32, %arg1: i32) -> (i32, i32, i32) {
    %c0_i32 = arith.constant 0 : i32
    %c0_i32_0 = arith.constant 0 : i32
    return %arg0, %arg1, %c0_i32 : i32, i32, i32
  }
  func.func @transform_1(%arg0: i32, %arg1: i32) -> (i32, i32) {
    %c0_i32 = arith.constant 0 : i32
    %c0_i32_0 = arith.constant 0 : i32
    %c0_i32_1 = arith.constant 0 : i32
    return %c0_i32, %c0_i32_0 : i32, i32
  }
  func.func @transform_2(%arg0: i32, %arg1: i32) -> (i32, i32) {
    %c0_i32 = arith.constant 0 : i32
    %c0_i32_0 = arith.constant 0 : i32
    %c0_i32_1 = arith.constant 0 : i32
    return %c0_i32, %c0_i32_0 : i32, i32
  }
  func.func @transform_3(%arg0: i32, %arg1: i32) -> (i32, i32) {
    %c0_i32 = arith.constant 0 : i32
    %c0_i32_0 = arith.constant 0 : i32
    %c0_i32_1 = arith.constant 0 : i32
    return %c0_i32, %c0_i32_0 : i32, i32
  }
  func.func @transform_4(%arg0: i32, %arg1: i32) -> (i32, i32) {
    %c0_i32 = arith.constant 0 : i32
    %c0_i32_0 = arith.constant 0 : i32
    %c0_i32_1 = arith.constant 0 : i32
    return %c0_i32, %c0_i32_0 : i32, i32
  }
  func.func @transform_5(%arg0: i32, %arg1: i32) -> (i32, i32, i32) {
    %c0_i32 = arith.constant 0 : i32
    %c0_i32_0 = arith.constant 0 : i32
    return %arg0, %arg1, %c0_i32 : i32, i32, i32
  }
  func.func @transform_6(%arg0: i32, %arg1: i32) -> (i32, i32, i32) {
    %c0_i32 = arith.constant 0 : i32
    %c0_i32_0 = arith.constant 0 : i32
    return %arg0, %arg1, %c0_i32 : i32, i32, i32
  }
}

module attributes {stable_mosaic.version = 11 : i64} {
  func.func @_span_grid_kernel(%arg0: i32, %arg1: i32, %arg2: i32, %arg3: memref<1x8x5xf32, #tpu.memory_space<vmem>>, %arg4: memref<1x5x8xf32, #tpu.memory_space<vmem>>, %arg5: memref<1x5x8x8xf32, #tpu.memory_space<vmem>>) attributes {dimension_semantics = [#tpu.dimension_semantics<parallel>, #tpu.dimension_semantics<parallel>, #tpu.dimension_semantics<parallel>], iteration_bounds = array<i64: 2, 1, 1>, scalar_prefetch = 0 : i64, scratch_operands = 0 : i64, tpu.core_type = #tpu.core_type<tc>, window_params = [{transform_indices = @transform_0, window_bounds = array<i64: 1, 8, 5>}, {transform_indices = @transform_1, window_bounds = array<i64: 1, 5, 8>}, {transform_indices = @transform_2, window_bounds = array<i64: 1, 5, 8, 8>}]} {
    %c1_i32 = arith.constant 1 : i32
    %0 = arith.addi %arg2, %c1_i32 : i32
    %c8_i32 = arith.constant 8 : i32
    %1 = arith.muli %0, %c8_i32 : i32
    %c8_i32_0 = arith.constant 8 : i32
    %2 = arith.muli %arg1, %c8_i32_0 : i32
    %3 = arith.cmpi sle, %1, %2 : i32
    %4 = arith.extui %3 : i1 to i32
    %c0_i32 = arith.constant 0 : i32
    %5 = arith.cmpi ne, %4, %c0_i32 : i32
    scf.if %5 {
      %cst = arith.constant 0.000000e+00 : f32
      %12 = vector.broadcast %cst : f32 to vector<1x5x8x8xf32>
      %c0 = arith.constant 0 : index
      %c0_5 = arith.constant 0 : index
      %c0_6 = arith.constant 0 : index
      %c0_7 = arith.constant 0 : index
      %13 = vector.load %arg5[%c0, %c0_5, %c0_6, %c0_7] : memref<1x5x8x8xf32, #tpu.memory_space<vmem>>, vector<1x5x8x8xf32>
      tpu.vector_store %arg5[%c0, %c0_5, %c0_6, %c0_7], %12 {strides = array<i32>} : memref<1x5x8x8xf32, #tpu.memory_space<vmem>>, vector<1x5x8x8xf32>,
    } else {
    }
    %c1_i32_1 = arith.constant 1 : i32
    %6 = arith.addi %arg2, %c1_i32_1 : i32
    %c8_i32_2 = arith.constant 8 : i32
    %7 = arith.muli %6, %c8_i32_2 : i32
    %c8_i32_3 = arith.constant 8 : i32
    %8 = arith.muli %arg1, %c8_i32_3 : i32
    %9 = arith.cmpi sgt, %7, %8 : i32
    %10 = arith.extui %9 : i1 to i32
    %c0_i32_4 = arith.constant 0 : i32
    %11 = arith.cmpi ne, %10, %c0_i32_4 : i32
    scf.if %11 {
      %c0 = arith.constant 0 : index
      %c0_5 = arith.constant 0 : index
      %c0_6 = arith.constant 0 : index
      %12 = vector.load %arg3[%c0, %c0_5, %c0_6] : memref<1x8x5xf32, #tpu.memory_space<vmem>>, vector<1x8x5xf32>
      %13 = vector.shape_cast %12 : vector<1x8x5xf32> to vector<8x5xf32>
      %c0_7 = arith.constant 0 : index
      %c0_8 = arith.constant 0 : index
      %c0_9 = arith.constant 0 : index
      %14 = vector.load %arg4[%c0_7, %c0_8, %c0_9] : memref<1x5x8xf32, #tpu.memory_space<vmem>>, vector<1x5x8xf32>
      %15 = vector.shape_cast %14 : vector<1x5x8xf32> to vector<5x8xf32>
      %16 = vector.extract_strided_slice %13 {offsets = [0, 0], sizes = [8, 1], strides = [1, 1]} : vector<8x5xf32> to vector<8x1xf32>
      %17 = vector.extract_strided_slice %15 {offsets = [0, 0], sizes = [1, 8], strides = [1, 1]} : vector<5x8xf32> to vector<1x8xf32>
      %18 = vector.extract_strided_slice %13 {offsets = [0, 1], sizes = [8, 1], strides = [1, 1]} : vector<8x5xf32> to vector<8x1xf32>
      %19 = arith.maximumf %16, %18 : vector<8x1xf32>
      %20 = vector.extract_strided_slice %15 {offsets = [1, 0], sizes = [1, 8], strides = [1, 1]} : vector<5x8xf32> to vector<1x8xf32>
      %21 = arith.maximumf %17, %20 : vector<1x8xf32>
      %22 = vector.extract_strided_slice %13 {offsets = [0, 2], sizes = [8, 1], strides = [1, 1]} : vector<8x5xf32> to vector<8x1xf32>
      %23 = arith.maximumf %19, %22 : vector<8x1xf32>
      %24 = vector.extract_strided_slice %15 {offsets = [2, 0], sizes = [1, 8], strides = [1, 1]} : vector<5x8xf32> to vector<1x8xf32>
      %25 = arith.maximumf %21, %24 : vector<1x8xf32>
      %26 = vector.extract_strided_slice %13 {offsets = [0, 3], sizes = [8, 1], strides = [1, 1]} : vector<8x5xf32> to vector<8x1xf32>
      %27 = arith.maximumf %23, %26 : vector<8x1xf32>
      %28 = vector.extract_strided_slice %15 {offsets = [3, 0], sizes = [1, 8], strides = [1, 1]} : vector<5x8xf32> to vector<1x8xf32>
      %29 = arith.maximumf %25, %28 : vector<1x8xf32>
      %30 = vector.extract_strided_slice %13 {offsets = [0, 4], sizes = [8, 1], strides = [1, 1]} : vector<8x5xf32> to vector<8x1xf32>
      %31 = arith.maximumf %27, %30 : vector<8x1xf32>
      %32 = vector.extract_strided_slice %15 {offsets = [4, 0], sizes = [1, 8], strides = [1, 1]} : vector<5x8xf32> to vector<1x8xf32>
      %33 = arith.maximumf %29, %32 : vector<1x8xf32>
      %34 = vector.broadcast %31 : vector<8x1xf32> to vector<8x5xf32>
      %35 = arith.subf %13, %34 : vector<8x5xf32>
      %36 = math.exp %35 : vector<8x5xf32>
      %37 = vector.broadcast %33 : vector<1x8xf32> to vector<5x8xf32>
      %38 = arith.subf %15, %37 : vector<5x8xf32>
      %39 = math.exp %38 : vector<5x8xf32>
      %cst = arith.constant dense<0.000000e+00> : vector<8x8xf32>
      %40 = tpu.matmul %36, %39, %cst {dimension_numbers = #tpu.dot_dimension_numbers<[1], [0], [0], [1], [0, 0, 1, 1], [], []>} : vector<8x5xf32>, vector<5x8xf32>, vector<8x8xf32> -> vector<8x8xf32>
      %41 = tpu.reciprocal %40 {approx = true} : vector<8x8xf32> -> vector<8x8xf32>
      %42 = arith.mulf %40, %41 : vector<8x8xf32>
      %cst_10 = arith.constant 2.000000e+00 : f32
      %43 = vector.broadcast %cst_10 : f32 to vector<8x8xf32>
      %44 = arith.subf %43, %42 : vector<8x8xf32>
      %45 = arith.mulf %41, %44 : vector<8x8xf32>
      %46 = vector.extract_strided_slice %36 {offsets = [0, 0], sizes = [8, 1], strides = [1, 1]} : vector<8x5xf32> to vector<8x1xf32>
      %47 = vector.extract_strided_slice %39 {offsets = [0, 0], sizes = [1, 8], strides = [1, 1]} : vector<5x8xf32> to vector<1x8xf32>
      %48 = vector.broadcast %46 : vector<8x1xf32> to vector<8x8xf32>
      %49 = vector.broadcast %47 : vector<1x8xf32> to vector<8x8xf32>
      %50 = arith.mulf %48, %49 : vector<8x8xf32>
      %51 = arith.mulf %50, %45 : vector<8x8xf32>
      %c0_11 = arith.constant 0 : index
      %c0_12 = arith.constant 0 : index
      %c0_13 = arith.constant 0 : index
      %c0_14 = arith.constant 0 : index
      %52 = vector.load %arg5[%c0_11, %c0_12, %c0_13, %c0_14] : memref<1x5x8x8xf32, #tpu.memory_space<vmem>>, vector<1x1x8x8xf32>
      %53 = vector.shape_cast %52 : vector<1x1x8x8xf32> to vector<8x8xf32>
      %54 = vector.shape_cast %51 : vector<8x8xf32> to vector<1x1x8x8xf32>
      tpu.vector_store %arg5[%c0_11, %c0_12, %c0_13, %c0_14], %54 {strides = array<i32>} : memref<1x5x8x8xf32, #tpu.memory_space<vmem>>, vector<1x1x8x8xf32>,
      %55 = vector.extract_strided_slice %36 {offsets = [0, 1], sizes = [8, 1], strides = [1, 1]} : vector<8x5xf32> to vector<8x1xf32>
      %56 = vector.extract_strided_slice %39 {offsets = [1, 0], sizes = [1, 8], strides = [1, 1]} : vector<5x8xf32> to vector<1x8xf32>
      %57 = vector.broadcast %55 : vector<8x1xf32> to vector<8x8xf32>
      %58 = vector.broadcast %56 : vector<1x8xf32> to vector<8x8xf32>
      %59 = arith.mulf %57, %58 : vector<8x8xf32>
      %60 = arith.mulf %59, %45 : vector<8x8xf32>
      %c0_15 = arith.constant 0 : index
      %c1 = arith.constant 1 : index
      %c0_16 = arith.constant 0 : index
      %c0_17 = arith.constant 0 : index
      %61 = vector.load %arg5[%c0_15, %c1, %c0_16, %c0_17] : memref<1x5x8x8xf32, #tpu.memory_space<vmem>>, vector<1x1x8x8xf32>
      %62 = vector.shape_cast %61 : vector<1x1x8x8xf32> to vector<8x8xf32>
      %63 = vector.shape_cast %60 : vector<8x8xf32> to vector<1x1x8x8xf32>
      tpu.vector_store %arg5[%c0_15, %c1, %c0_16, %c0_17], %63 {strides = array<i32>} : memref<1x5x8x8xf32, #tpu.memory_space<vmem>>, vector<1x1x8x8xf32>,
      %64 = vector.extract_strided_slice %36 {offsets = [0, 2], sizes = [8, 1], strides = [1, 1]} : vector<8x5xf32> to vector<8x1xf32>
      %65 = vector.extract_strided_slice %39 {offsets = [2, 0], sizes = [1, 8], strides = [1, 1]} : vector<5x8xf32> to vector<1x8xf32>
      %66 = vector.broadcast %64 : vector<8x1xf32> to vector<8x8xf32>
      %67 = vector.broadcast %65 : vector<1x8xf32> to vector<8x8xf32>
      %68 = arith.mulf %66, %67 : vector<8x8xf32>
      %69 = arith.mulf %68, %45 : vector<8x8xf32>
      %c0_18 = arith.constant 0 : index
      %c2 = arith.constant 2 : index
      %c0_19 = arith.constant 0 : index
      %c0_20 = arith.constant 0 : index
      %70 = vector.load %arg5[%c0_18, %c2, %c0_19, %c0_20] : memref<1x5x8x8xf32, #tpu.memory_space<vmem>>, vector<1x1x8x8xf32>
      %71 = vector.shape_cast %70 : vector<1x1x8x8xf32> to vector<8x8xf32>
      %72 = vector.shape_cast %69 : vector<8x8xf32> to vector<1x1x8x8xf32>
      tpu.vector_store %arg5[%c0_18, %c2, %c0_19, %c0_20], %72 {strides = array<i32>} : memref<1x5x8x8xf32, #tpu.memory_space<vmem>>, vector<1x1x8x8xf32>,
      %73 = vector.extract_strided_slice %36 {offsets = [0, 3], sizes = [8, 1], strides = [1, 1]} : vector<8x5xf32> to vector<8x1xf32>
      %74 = vector.extract_strided_slice %39 {offsets = [3, 0], sizes = [1, 8], strides = [1, 1]} : vector<5x8xf32> to vector<1x8xf32>
      %75 = vector.broadcast %73 : vector<8x1xf32> to vector<8x8xf32>
      %76 = vector.broadcast %74 : vector<1x8xf32> to vector<8x8xf32>
      %77 = arith.mulf %75, %76 : vector<8x8xf32>
      %78 = arith.mulf %77, %45 : vector<8x8xf32>
      %c0_21 = arith.constant 0 : index
      %c3 = arith.constant 3 : index
      %c0_22 = arith.constant 0 : index
      %c0_23 = arith.constant 0 : index
      %79 = vector.load %arg5[%c0_21, %c3, %c0_22, %c0_23] : memref<1x5x8x8xf32, #tpu.memory_space<vmem>>, vector<1x1x8x8xf32>
      %80 = vector.shape_cast %79 : vector<1x1x8x8xf32> to vector<8x8xf32>
      %81 = vector.shape_cast %78 : vector<8x8xf32> to vector<1x1x8x8xf32>
      tpu.vector_store %arg5[%c0_21, %c3, %c0_22, %c0_23], %81 {strides = array<i32>} : memref<1x5x8x8xf32, #tpu.memory_space<vmem>>, vector<1x1x8x8xf32>,
      %82 = vector.extract_strided_slice %36 {offsets = [0, 4], sizes = [8, 1], strides = [1, 1]} : vector<8x5xf32> to vector<8x1xf32>
      %83 = vector.extract_strided_slice %39 {offsets = [4, 0], sizes = [1, 8], strides = [1, 1]} : vector<5x8xf32> to vector<1x8xf32>
      %84 = vector.broadcast %82 : vector<8x1xf32> to vector<8x8xf32>
      %85 = vector.broadcast %83 : vector<1x8xf32> to vector<8x8xf32>
      %86 = arith.mulf %84, %85 : vector<8x8xf32>
      %87 = arith.mulf %86, %45 : vector<8x8xf32>
      %c0_24 = arith.constant 0 : index
      %c4 = arith.constant 4 : index
      %c0_25 = arith.constant 0 : index
      %c0_26 = arith.constant 0 : index
      %88 = vector.load %arg5[%c0_24, %c4, %c0_25, %c0_26] : memref<1x5x8x8xf32, #tpu.memory_space<vmem>>, vector<1x1x8x8xf32>
      %89 = vector.shape_cast %88 : vector<1x1x8x8xf32> to vector<8x8xf32>
      %90 = vector.shape_cast %87 : vector<8x8xf32> to vector<1x1x8x8xf32>
      tpu.vector_store %arg5[%c0_24, %c4, %c0_25, %c0_26], %90 {strides = array<i32>} : memref<1x5x8x8xf32, #tpu.memory_space<vmem>>, vector<1x1x8x8xf32>,
    } else {
    }
    return
  }
  func.func @transform_0(%arg0: i32, %arg1: i32, %arg2: i32) -> (i32, i32, i32) {
    %c0_i32 = arith.constant 0 : i32
    %c0_i32_0 = arith.constant 0 : i32
    return %arg0, %arg1, %c0_i32 : i32, i32, i32
  }
  func.func @transform_1(%arg0: i32, %arg1: i32, %arg2: i32) -> (i32, i32, i32) {
    %c0_i32 = arith.constant 0 : i32
    %c0_i32_0 = arith.constant 0 : i32
    return %arg0, %c0_i32, %arg2 : i32, i32, i32
  }
  func.func @transform_2(%arg0: i32, %arg1: i32, %arg2: i32) -> (i32, i32, i32, i32) {
    %c0_i32 = arith.constant 0 : i32
    %c0_i32_0 = arith.constant 0 : i32
    return %arg0, %c0_i32, %arg1, %arg2 : i32, i32, i32, i32
  }
}

</mosaic_0001>

<llo_original>
// kernel: span_classifier_forward.2
$region0: #{span_classifier_forward.2}
  #allocation0 [shape = 'u32[]', space=smem, size = 0x4, offset = 0x4, fixed_abs, tag = 'smem constant byte address 0x4 - core index']
  #allocation1 [shape = 'u32[144,128]{1,0:T(1,128)}', space=vmem, size = 0x12000, scoped, tag = 'internal scratch']
  %s0 = inlined_call_operand.vmem [shape: f32[2,8,32], index: 0, kind: input, shape index: {}]
  %s1 = inlined_call_operand.vmem [shape: f32[32,5], index: 1, kind: input, shape index: {}]
  %s2 = inlined_call_operand.vmem [shape: f32[1,5], index: 2, kind: input, shape index: {}]
  %s3 = inlined_call_operand.vmem [shape: f32[32,5], index: 3, kind: input, shape index: {}]
  %s4 = inlined_call_operand.vmem [shape: f32[1,5], index: 4, kind: input, shape index: {}]
  %s5 = inlined_call_operand.vmem [shape: f32[2,8,5], index: 5, kind: output, shape index: {0}]
  %s6 = inlined_call_operand.vmem [shape: f32[2,8,5], index: 6, kind: output, shape index: {1}]
  %7 = xla_tuple %s5, %s6
  %s8 = sld [smem:[#allocation0]]
  $region61: #{span_classifier_forward.2} parent=0
    _
  %s10 = ssub.s32 1, %s8
  %s11 = scalar_select 0, %s10, %s8
  loop: start=0, step=1, limit=4
  $region2: #{span_classifier_forward.2} parent=0 // loop_pre_header
    _
  $region3: #{span_classifier_forward.2} parent=0 // loop_header
    %s13 = sphi 0, %s17
    %p14 = scmp.ge.s32.totalorder %s13, 4
    %s20 = sphi 0, %s32
    %s21 = sphi 0, %s28
    %s22 = sphi 0, %s20
    %s23 = sphi 0, %s21
    %s24 = sphi 0, %s22
    %s25 = sphi 0, %s23
    %s37 = sphi 0, %s39
    %s40 = sphi 0, %s37
    %s41 = sphi 0, %s40
    %s57 = sphi 0, %s41
    %s61 = sphi 0, %s61
    %s63 = sphi 0, %s61
    %s64 = sphi 0, %s63
    %s78 = sphi 0, %s64
    %s82 = sphi 0, %s82
    %s84 = sphi 0, %s82
    %s85 = sphi 0, %s84
    %s99 = sphi 0, %s85
    %s103 = sphi 0, %s103
    %s105 = sphi 0, %s103
    %s106 = sphi 0, %s105
    %s120 = sphi 0, %s106
    %s124 = sphi 0, %s124
    %s126 = sphi 0, %s124
    %s127 = sphi 0, %s126
    %s141 = sphi 0, %s127
    %s149 = sphi 0, %s151
    %s152 = sphi 0, %s149
    %s153 = sphi 0, %s152
    %s169 = sphi 0, %s153
    %s177 = sphi 0, %s179
    %s180 = sphi 0, %s177
    %s181 = sphi 0, %s180
    %s197 = sphi 0, %s181
  $region4: #{span_classifier_forward.2} parent=0 // loop_header_branch
    %16 = sbr.rel (%p14) target = $region8
  $region5: #{span_classifier_forward.2} parent=0 // loop_body
    %s18 = ssub.s32 %s13, 1
    %s19 = ssub.s32 %s13, 2
    %s26 = sadd.s32 1, %s21
    %p27 = scmp.ge.s32.totalorder %s26, 1
    %s28 = scalar_select %p27, 0, %s26
    %s29 = sadd.s32 1, %s20
    %s30 = scalar_select %p27, %s29, %s20
    %p31 = scmp.ge.s32.totalorder %s30, 2
    %s32 = scalar_select %p31, 0, %s30
    %s33 = ssub.s32 %s20, %s32
    %s34 = ssub.s32 %s21, %s28
    %s35 = sor.u32 %s33, %s34
    %p36 = scmp.eq.s32.totalorder %s35, 0
    %s38 = sadd.s32 %s37, 1
    %s39 = scalar_select %p36, %s37, %s38
    %p42 = pneg %p36
    %p43 = scmp.eq.s32.totalorder %s13, 1
    %p44 = por %p42, %p43
    %p45 = scmp.ne.s32.totalorder %s37, %s40
    %p46 = scmp.eq.s32.totalorder %s13, 0
    %p47 = por %p45, %p46
    %p48 = scmp.ne.s32.totalorder %s37, %s40
    %p49 = scmp.eq.s32.totalorder %s18, 1
    %p50 = por %p48, %p49
    %p51 = scmp.ne.s32.totalorder %s40, %s41
    %p52 = scmp.eq.s32.totalorder %s18, 0
    %p53 = por %p51, %p52
    %p54 = scmp.ne.s32.totalorder %s40, %s41
    %p55 = scmp.eq.s32.totalorder %s19, 1
    %p56 = por %p54, %p55
    %p58 = scmp.ne.s32.totalorder %s41, %s57
    %p59 = scmp.eq.s32.totalorder %s19, 0
    %p60 = por %p58, %p59
    %s62 = sadd.s32 %s61, 1
    %p65 = scmp.eq.s32.totalorder %s13, 1
    %p66 = scmp.ne.s32.totalorder %s61, %s63
    %p67 = scmp.eq.s32.totalorder %s13, 0
    %p68 = por %p66, %p67
    %p69 = scmp.ne.s32.totalorder %s61, %s63
    %p70 = scmp.eq.s32.totalorder %s18, 1
    %p71 = por %p69, %p70
    %p72 = scmp.ne.s32.totalorder %s63, %s64
    %p73 = scmp.eq.s32.totalorder %s18, 0
    %p74 = por %p72, %p73
    %p75 = scmp.ne.s32.totalorder %s63, %s64
    %p76 = scmp.eq.s32.totalorder %s19, 1
    %p77 = por %p75, %p76
    %p79 = scmp.ne.s32.totalorder %s64, %s78
    %p80 = scmp.eq.s32.totalorder %s19, 0
    %p81 = por %p79, %p80
    %s83 = sadd.s32 %s82, 1
    %p86 = scmp.eq.s32.totalorder %s13, 1
    %p87 = scmp.ne.s32.totalorder %s82, %s84
    %p88 = scmp.eq.s32.totalorder %s13, 0
    %p89 = por %p87, %p88
    %p90 = scmp.ne.s32.totalorder %s82, %s84
    %p91 = scmp.eq.s32.totalorder %s18, 1
    %p92 = por %p90, %p91
    %p93 = scmp.ne.s32.totalorder %s84, %s85
    %p94 = scmp.eq.s32.totalorder %s18, 0
    %p95 = por %p93, %p94
    %p96 = scmp.ne.s32.totalorder %s84, %s85
    %p97 = scmp.eq.s32.totalorder %s19, 1
    %p98 = por %p96, %p97
    %p100 = scmp.ne.s32.totalorder %s85, %s99
    %p101 = scmp.eq.s32.totalorder %s19, 0
    %p102 = por %p100, %p101
    %s104 = sadd.s32 %s103, 1
    %p107 = scmp.eq.s32.totalorder %s13, 1
    %p108 = scmp.ne.s32.totalorder %s103, %s105
    %p109 = scmp.eq.s32.totalorder %s13, 0
    %p110 = por %p108, %p109
    %p111 = scmp.ne.s32.totalorder %s103, %s105
    %p112 = scmp.eq.s32.totalorder %s18, 1
    %p113 = por %p111, %p112
    %p114 = scmp.ne.s32.totalorder %s105, %s106
    %p115 = scmp.eq.s32.totalorder %s18, 0
    %p116 = por %p114, %p115
    %p117 = scmp.ne.s32.totalorder %s105, %s106
    %p118 = scmp.eq.s32.totalorder %s19, 1
    %p119 = por %p117, %p118
    %p121 = scmp.ne.s32.totalorder %s106, %s120
    %p122 = scmp.eq.s32.totalorder %s19, 0
    %p123 = por %p121, %p122
    %s125 = sadd.s32 %s124, 1
    %p128 = scmp.eq.s32.totalorder %s13, 1
    %p129 = scmp.ne.s32.totalorder %s124, %s126
    %p130 = scmp.eq.s32.totalorder %s13, 0
    %p131 = por %p129, %p130
    %p132 = scmp.ne.s32.totalorder %s124, %s126
    %p133 = scmp.eq.s32.totalorder %s18, 1
    %p134 = por %p132, %p133
    %p135 = scmp.ne.s32.totalorder %s126, %s127
    %p136 = scmp.eq.s32.totalorder %s18, 0
    %p137 = por %p135, %p136
    %p138 = scmp.ne.s32.totalorder %s126, %s127
    %p139 = scmp.eq.s32.totalorder %s19, 1
    %p140 = por %p138, %p139
    %p142 = scmp.ne.s32.totalorder %s127, %s141
    %p143 = scmp.eq.s32.totalorder %s19, 0
    %p144 = por %p142, %p143
    %s145 = ssub.s32 %s20, %s32
    %s146 = ssub.s32 %s21, %s28
    %s147 = sor.u32 %s145, %s146
    %p148 = scmp.eq.s32.totalorder %s147, 0
    %s150 = sadd.s32 %s149, 1
    %s151 = scalar_select %p148, %s149, %s150
    %p154 = pneg %p148
    %p155 = scmp.eq.s32.totalorder %s13, 1
    %p156 = por %p154, %p155
    %p157 = scmp.ne.s32.totalorder %s149, %s152
    %p158 = scmp.eq.s32.totalorder %s13, 0
    %p159 = por %p157, %p158
    %p160 = scmp.ne.s32.totalorder %s149, %s152
    %p161 = scmp.eq.s32.totalorder %s18, 1
    %p162 = por %p160, %p161
    %p163 = scmp.ne.s32.totalorder %s152, %s153
    %p164 = scmp.eq.s32.totalorder %s18, 0
    %p165 = por %p163, %p164
    %p166 = scmp.ne.s32.totalorder %s152, %s153
    %p167 = scmp.eq.s32.totalorder %s19, 1
    %p168 = por %p166, %p167
    %p170 = scmp.ne.s32.totalorder %s153, %s169
    %p171 = scmp.eq.s32.totalorder %s19, 0
    %p172 = por %p170, %p171
    %s173 = ssub.s32 %s20, %s32
    %s174 = ssub.s32 %s21, %s28
    %s175 = sor.u32 %s173, %s174
    %p176 = scmp.eq.s32.totalorder %s175, 0
    %s178 = sadd.s32 %s177, 1
    %s179 = scalar_select %p176, %s177, %s178
    %p182 = pneg %p176
    %p183 = scmp.eq.s32.totalorder %s13, 1
    %p184 = por %p182, %p183
    %p185 = scmp.ne.s32.totalorder %s177, %s180
    %p186 = scmp.eq.s32.totalorder %s13, 0
    %p187 = por %p185, %p186
    %p188 = scmp.ne.s32.totalorder %s177, %s180
    %p189 = scmp.eq.s32.totalorder %s18, 1
    %p190 = por %p188, %p189
    %p191 = scmp.ne.s32.totalorder %s180, %s181
    %p192 = scmp.eq.s32.totalorder %s18, 0
    %p193 = por %p191, %p192
    %p194 = scmp.ne.s32.totalorder %s180, %s181
    %p195 = scmp.eq.s32.totalorder %s19, 1
    %p196 = por %p194, %p195
    %p198 = scmp.ne.s32.totalorder %s181, %s197
    %p199 = scmp.eq.s32.totalorder %s19, 0
    %p200 = por %p198, %p199
    %p201 = scmp.le.s32.totalorder 1, %s13
    %p202 = scmp.lt.s32.totalorder %s13, 3
    %p203 = pnand %p201, %p202
    %p204 = pneg %p203
    // Predicated region
    $region9: #{span_classifier_forward.2} parent=5 // pred_check
      _
    $region10: #{span_classifier_forward.2} parent=5 // pred_check_branch
      %206 = sbr.rel (%p203) target = $region12
    $region11: #{span_classifier_forward.2} parent=5 // pred_region
      %s207 = ssub.s32 %s13, 1
      // Predicated region
      $region13: #{span_classifier_forward.2} parent=11 // pred_check
        %p208 = pneg %p74
      $region14: #{span_classifier_forward.2} parent=11 // pred_check_branch
        %210 = sbr.rel (%p208) target = $region16
      $region15: #{span_classifier_forward.2} parent=11 // pred_region
        _
      $region16: #{span_classifier_forward.2} parent=11 // pred_fallthru
        _
      // Predicated region
      $region17: #{span_classifier_forward.2} parent=11 // pred_check
        %p211 = pneg %p95
      $region18: #{span_classifier_forward.2} parent=11 // pred_check_branch
        %213 = sbr.rel (%p211) target = $region20
      $region19: #{span_classifier_forward.2} parent=11 // pred_region
        _
      $region20: #{span_classifier_forward.2} parent=11 // pred_fallthru
        _
      // Predicated region
      $region21: #{span_classifier_forward.2} parent=11 // pred_check
        %p214 = pneg %p116
      $region22: #{span_classifier_forward.2} parent=11 // pred_check_branch
        %216 = sbr.rel (%p214) target = $region24
      $region23: #{span_classifier_forward.2} parent=11 // pred_region
        _
      $region24: #{span_classifier_forward.2} parent=11 // pred_fallthru
        _
      // Predicated region
      $region25: #{span_classifier_forward.2} parent=11 // pred_check
        %p217 = pneg %p137
      $region26: #{span_classifier_forward.2} parent=11 // pred_check_branch
        %219 = sbr.rel (%p217) target = $region28
      $region27: #{span_classifier_forward.2} parent=11 // pred_region
        _
      $region28: #{span_classifier_forward.2} parent=11 // pred_fallthru
        _
    $region12: #{span_classifier_forward.2} parent=5 // pred_fallthru
      _
    %p220 = scmp.lt.s32.totalorder %s13, 2
    // Predicated region
    $region29: #{span_classifier_forward.2} parent=5 // pred_check
      %p221 = pneg %p220
    $region30: #{span_classifier_forward.2} parent=5 // pred_check_branch
      %223 = sbr.rel (%p221) target = $region32
    $region31: #{span_classifier_forward.2} parent=5 // pred_region
      // Predicated region
      $region33: #{span_classifier_forward.2} parent=31 // pred_check
        %p224 = pneg %p47
      $region34: #{span_classifier_forward.2} parent=31 // pred_check_branch
        %226 = sbr.rel (%p224) target = $region36
      $region35: #{span_classifier_forward.2} parent=31 // pred_region
        %p227 = scmp.lt.s32.totalorder %s20, 1
        %s228 = scalar_select %p227, %s20, 1
        %p229 = scmp.lt.s32.totalorder %s21, 0
        %s230 = scalar_select %p229, %s21, 0
        %s231 = sadd.s32 %s230, %s228
        %s232 = smul.addr %s231, 8
        %s233 = scalar_lea.vmem %s0, %s232
      $region36: #{span_classifier_forward.2} parent=31 // pred_fallthru
        _
    $region32: #{span_classifier_forward.2} parent=5 // pred_fallthru
      _
    %p234 = scmp.le.s32.totalorder 1, %s13
    %p235 = scmp.lt.s32.totalorder %s13, 3
    %p236 = pnand %p234, %p235
    %p237 = pneg %p236
    // Predicated region
    $region37: #{span_classifier_forward.2} parent=5 // pred_check
      _
    $region38: #{span_classifier_forward.2} parent=5 // pred_check_branch
      %239 = sbr.rel (%p236) target = $region40
    $region39: #{span_classifier_forward.2} parent=5 // pred_region
      %s240 = ssub.s32 %s13, 1
      %p241 = scmp.lt.s32.totalorder %s22, 1
      %s242 = scalar_select %p241, %s22, 1
      %p243 = scmp.lt.s32.totalorder %s23, 0
      %s244 = scalar_select %p243, %s23, 0
      %s245 = sadd.s32 %s244, %s242
      %s246 = smul.addr %s245, 8
      %s247 = scalar_lea.vmem %s0, %s246
      %p248 = pneg %p53
      %p249 = pneg %p50
      %p250 = pneg %p74
      %p251 = pneg %p71
      %p252 = pneg %p95
      %p253 = pneg %p92
      %p254 = pneg %p116
      %p255 = pneg %p113
      %p256 = pneg %p137
      %p257 = pneg %p134
      %p258 = pneg %p165
      %p259 = pneg %p162
      %p260 = scmp.lt.s32.totalorder %s22, 1
      %s261 = scalar_select %p260, %s22, 1
      %p262 = scmp.lt.s32.totalorder %s23, 0
      %s263 = scalar_select %p262, %s23, 0
      %s264 = sadd.s32 %s263, %s261
      %s265 = smul.addr %s264, 8
      %s266 = scalar_lea.vmem %s5, %s265
      %p267 = pneg %p193
      %p268 = pneg %p190
      %p269 = scmp.lt.s32.totalorder %s22, 1
      %s270 = scalar_select %p269, %s22, 1
      %p271 = scmp.lt.s32.totalorder %s23, 0
      %s272 = scalar_select %p271, %s23, 0
      %s273 = sadd.s32 %s272, %s270
      %s274 = smul.addr %s273, 8
      %s275 = scalar_lea.vmem %s6, %s274
      %p276 = scmp.lt.s32.totalorder %s22, 1
      %s277 = scalar_select %p276, %s22, 1
      %p278 = scmp.lt.s32.totalorder %s23, 0
      %s279 = scalar_select %p278, %s23, 0
      %s280 = sadd.s32 %s279, %s277
      %s281 = smul.addr %s280, 8
      %s282 = scalar_lea.vmem %s0, %s281
      %p283 = scmp.lt.s32.totalorder %s22, 1
      %s284 = scalar_select %p283, %s22, 1
      %p285 = scmp.lt.s32.totalorder %s23, 0
      %s286 = scalar_select %p285, %s23, 0
      %s287 = sadd.s32 %s286, %s284
      %s288 = smul.addr %s287, 8
      %s289 = scalar_lea.vmem %s5, %s288
      %p290 = scmp.lt.s32.totalorder %s22, 1
      %s291 = scalar_select %p290, %s22, 1
      %p292 = scmp.lt.s32.totalorder %s23, 0
      %s293 = scalar_select %p292, %s23, 0
      %s294 = sadd.s32 %s293, %s291
      %s295 = smul.addr %s294, 8
      %s296 = scalar_lea.vmem %s6, %s295
      %v297 = vld [vmem:[%s282] sm:$0xff]
      %v298 = vld [vmem:[%s1] sm:$0xff]
      %v299 = vld [vmem:[%s1 + $0x8] sm:$0xff]
      %v300 = vld [vmem:[%s1 + $0x10] sm:$0xff]
      %v301 = vld [vmem:[%s1 + $0x18] sm:$0xff]
      %v302 = vld [vmem:[%s2] sm:$0x1]
      %v304 = vlaneseq
      %v305 = vshrl.u32 %v304, 7
      %v306 = vsub.s32 0, %v305
      %v307 = vrot.slane %v302, %v306
      %vm309 = vcmask 261120
      %v311 = vsel %vm309, %v297, 0
      %313 = vmatprep.subr.mxu0 0.0
      %314 = vmatpush1.msra.mxu0 %v298
      %315 = vmatprep.subr.mxu0 0.0
      %316 = vmatpush1.msra.mxu0 %v299
      %317 = vmatprep.subr.mxu0 0.0
      %318 = vmatpush1.msra.mxu0 %v300
      %319 = vmatprep.subr.mxu0 0.0
      %320 = vmatpush1.msra.mxu0 %v301
      %321 = vmatprep.subr.mxu0 0.0
      %322 = vmatpush1.msra.mxu0 0.0
      %323 = vmatprep.subr.mxu0 0.0
      %324 = vmatpush1.msra.mxu0 0.0
      %325 = vmatprep.subr.mxu0 0.0
      %326 = vmatpush1.msra.mxu0 0.0
      %327 = vmatprep.subr.mxu0 0.0
      %328 = vmatpush1.msra.mxu0 0.0
      %329 = vmatprep.subr.mxu0 0.0
      %330 = vmatpush1.msra.mxu0 0.0
      %331 = vmatprep.subr.mxu0 0.0
      %332 = vmatpush1.msra.mxu0 0.0
      %333 = vmatprep.subr.mxu0 0.0
      %334 = vmatpush1.msra.mxu0 0.0
      %335 = vmatprep.subr.mxu0 0.0
      %336 = vmatpush1.msra.mxu0 0.0
      %337 = vmatprep.subr.mxu0 0.0
      %338 = vmatpush1.msra.mxu0 0.0
      %339 = vmatprep.subr.mxu0 0.0
      %340 = vmatpush1.msra.mxu0 0.0
      %341 = vmatprep.subr.mxu0 0.0
      %342 = vmatpush1.msra.mxu0 0.0
      %343 = vmatprep.subr.mxu0 0.0
      %344 = vmatpush1.msra.mxu0 0.0
      %345 = vmatprep.subr.mxu0 0.0
      %346 = vmatpush1.msra.mxu0 0.0
      %347 = vmatprep.subr.mxu0 0.0
      %348 = vmatpush1.msra.mxu0 0.0
      %349 = vmatprep.subr.mxu0 0.0
      %350 = vmatpush1.msra.mxu0 0.0
      %351 = vmatprep.subr.mxu0 0.0
      %352 = vmatpush1.msra.mxu0 0.0
      %353 = vmatprep.subr.mxu0 0.0
      %354 = vmatpush1.msra.mxu0 0.0
      %355 = vmatprep.subr.mxu0 0.0
      %356 = vmatpush1.msra.mxu0 0.0
      %357 = vmatprep.subr.mxu0 0.0
      %358 = vmatpush1.msra.mxu0 0.0
      %359 = vmatprep.subr.mxu0 0.0
      %360 = vmatpush1.msra.mxu0 0.0
      %361 = vmatprep.subr.mxu0 0.0
      %362 = vmatpush1.msra.mxu0 0.0
      %363 = vmatprep.subr.mxu0 0.0
      %364 = vmatpush1.msra.mxu0 0.0
      %365 = vmatprep.subr.mxu0 0.0
      %366 = vmatpush1.msra.mxu0 0.0
      %367 = vmatprep.subr.mxu0 0.0
      %368 = vmatpush1.msra.mxu0 0.0
      %369 = vmatprep.subr.mxu0 0.0
      %370 = vmatpush1.msra.mxu0 0.0
      %371 = vmatprep.subr.mxu0 0.0
      %372 = vmatpush1.msra.mxu0 0.0
      %373 = vmatprep.subr.mxu0 0.0
      %374 = vmatpush1.msra.mxu0 0.0
      %375 = vmatprep.subr.mxu0 0.0
      %376 = vmatpush1.msra.mxu0 0.0
      %377 = vmatprep.mubr.f32.mxu0 0.0
      %378 = vmatmul.mubr.f32.gmra.mrb[0].mxu0 %v311
      %v379 = vpop.f32.mrb[0].mxu0
      %v380 = vadd.f32 %v307, %v379
      %v381 = vpop.f32.mrb[0].mxu0
      %382 = vdwg.mxu0
      %vm383 = vcmask 39936
      %384 = vst.msk [vmem:[%s289] sm:$0xff] %vm383, %v380
      %v385 = vld [vmem:[%s3] sm:$0xff]
      %v386 = vld [vmem:[%s3 + $0x8] sm:$0xff]
      %v387 = vld [vmem:[%s3 + $0x10] sm:$0xff]
      %v388 = vld [vmem:[%s3 + $0x18] sm:$0xff]
      %v389 = vld [vmem:[%s4] sm:$0x1]
      %v391 = vlaneseq
      %v392 = vshrl.u32 %v391, 7
      %v393 = vsub.s32 0, %v392
      %v394 = vrot.slane %v389, %v393
      %396 = vmatprep.subr.mxu0 0.0
      %397 = vmatpush1.msra.mxu0 %v385
      %398 = vmatprep.subr.mxu0 0.0
      %399 = vmatpush1.msra.mxu0 %v386
      %400 = vmatprep.subr.mxu0 0.0
      %401 = vmatpush1.msra.mxu0 %v387
      %402 = vmatprep.subr.mxu0 0.0
      %403 = vmatpush1.msra.mxu0 %v388
      %404 = vmatprep.subr.mxu0 0.0
      %405 = vmatpush1.msra.mxu0 0.0
      %406 = vmatprep.subr.mxu0 0.0
      %407 = vmatpush1.msra.mxu0 0.0
      %408 = vmatprep.subr.mxu0 0.0
      %409 = vmatpush1.msra.mxu0 0.0
      %410 = vmatprep.subr.mxu0 0.0
      %411 = vmatpush1.msra.mxu0 0.0
      %412 = vmatprep.subr.mxu0 0.0
      %413 = vmatpush1.msra.mxu0 0.0
      %414 = vmatprep.subr.mxu0 0.0
      %415 = vmatpush1.msra.mxu0 0.0
      %416 = vmatprep.subr.mxu0 0.0
      %417 = vmatpush1.msra.mxu0 0.0
      %418 = vmatprep.subr.mxu0 0.0
      %419 = vmatpush1.msra.mxu0 0.0
      %420 = vmatprep.subr.mxu0 0.0
      %421 = vmatpush1.msra.mxu0 0.0
      %422 = vmatprep.subr.mxu0 0.0
      %423 = vmatpush1.msra.mxu0 0.0
      %424 = vmatprep.subr.mxu0 0.0
      %425 = vmatpush1.msra.mxu0 0.0
      %426 = vmatprep.subr.mxu0 0.0
      %427 = vmatpush1.msra.mxu0 0.0
      %428 = vmatprep.subr.mxu0 0.0
      %429 = vmatpush1.msra.mxu0 0.0
      %430 = vmatprep.subr.mxu0 0.0
      %431 = vmatpush1.msra.mxu0 0.0
      %432 = vmatprep.subr.mxu0 0.0
      %433 = vmatpush1.msra.mxu0 0.0
      %434 = vmatprep.subr.mxu0 0.0
      %435 = vmatpush1.msra.mxu0 0.0
      %436 = vmatprep.subr.mxu0 0.0
      %437 = vmatpush1.msra.mxu0 0.0
      %438 = vmatprep.subr.mxu0 0.0
      %439 = vmatpush1.msra.mxu0 0.0
      %440 = vmatprep.subr.mxu0 0.0
      %441 = vmatpush1.msra.mxu0 0.0
      %442 = vmatprep.subr.mxu0 0.0
      %443 = vmatpush1.msra.mxu0 0.0
      %444 = vmatprep.subr.mxu0 0.0
      %445 = vmatpush1.msra.mxu0 0.0
      %446 = vmatprep.subr.mxu0 0.0
      %447 = vmatpush1.msra.mxu0 0.0
      %448 = vmatprep.subr.mxu0 0.0
      %449 = vmatpush1.msra.mxu0 0.0
      %450 = vmatprep.subr.mxu0 0.0
      %451 = vmatpush1.msra.mxu0 0.0
      %452 = vmatprep.subr.mxu0 0.0
      %453 = vmatpush1.msra.mxu0 0.0
      %454 = vmatprep.subr.mxu0 0.0
      %455 = vmatpush1.msra.mxu0 0.0
      %456 = vmatprep.subr.mxu0 0.0
      %457 = vmatpush1.msra.mxu0 0.0
      %458 = vmatprep.subr.mxu0 0.0
      %459 = vmatpush1.msra.mxu0 0.0
      %460 = vmatprep.mubr.f32.mxu0 0.0
      %461 = vmatmul.mubr.f32.gmra.mrb[0].mxu0 %v311
      %v462 = vpop.f32.mrb[0].mxu0
      %v463 = vadd.f32 %v394, %v462
      %v464 = vpop.f32.mrb[0].mxu0
      %465 = vdwg.mxu0
      %466 = vst.msk [vmem:[%s296] sm:$0xff] %vm383, %v463
      %p467 = scmp.lt.s32.totalorder %s22, 1
      %s468 = scalar_select %p467, %s22, 1
      %p469 = scmp.lt.s32.totalorder %s23, 0
      %s470 = scalar_select %p469, %s23, 0
      %s471 = sadd.s32 %s470, %s468
      %s472 = smul.addr %s471, 8
      %s473 = scalar_lea.vmem %s5, %s472
      %p474 = scmp.lt.s32.totalorder %s22, 1
      %s475 = scalar_select %p474, %s22, 1
      %p476 = scmp.lt.s32.totalorder %s23, 0
      %s477 = scalar_select %p476, %s23, 0
      %s478 = sadd.s32 %s477, %s475
      %s479 = smul.addr %s478, 8
      %s480 = scalar_lea.vmem %s6, %s479
      // Predicated region
      $region41: #{span_classifier_forward.2} parent=39 // pred_check
        %p481 = pneg %p162
      $region42: #{span_classifier_forward.2} parent=39 // pred_check_branch
        %483 = sbr.rel (%p481) target = $region44
      $region43: #{span_classifier_forward.2} parent=39 // pred_region
        _
      $region44: #{span_classifier_forward.2} parent=39 // pred_fallthru
        _
      // Predicated region
      $region45: #{span_classifier_forward.2} parent=39 // pred_check
        %p484 = pneg %p190
      $region46: #{span_classifier_forward.2} parent=39 // pred_check_branch
        %486 = sbr.rel (%p484) target = $region48
      $region47: #{span_classifier_forward.2} parent=39 // pred_region
        _
      $region48: #{span_classifier_forward.2} parent=39 // pred_fallthru
        _
    $region40: #{span_classifier_forward.2} parent=5 // pred_fallthru
      _
    %p487 = scmp.le.s32.totalorder 2, %s13
    // Predicated region
    $region49: #{span_classifier_forward.2} parent=5 // pred_check
      %p488 = pneg %p487
    $region50: #{span_classifier_forward.2} parent=5 // pred_check_branch
      %490 = sbr.rel (%p488) target = $region52
    $region51: #{span_classifier_forward.2} parent=5 // pred_region
      %s491 = ssub.s32 %s13, 2
      // Predicated region
      $region53: #{span_classifier_forward.2} parent=51 // pred_check
        %p492 = pneg %p168
      $region54: #{span_classifier_forward.2} parent=51 // pred_check_branch
        %494 = sbr.rel (%p492) target = $region56
      $region55: #{span_classifier_forward.2} parent=51 // pred_region
        %p495 = scmp.lt.s32.totalorder %s24, 1
        %s496 = scalar_select %p495, %s24, 1
        %p497 = scmp.lt.s32.totalorder %s25, 0
        %s498 = scalar_select %p497, %s25, 0
        %s499 = sadd.s32 %s498, %s496
        %s500 = smul.addr %s499, 8
        %s501 = scalar_lea.vmem %s5, %s500
      $region56: #{span_classifier_forward.2} parent=51 // pred_fallthru
        _
      // Predicated region
      $region57: #{span_classifier_forward.2} parent=51 // pred_check
        %p502 = pneg %p196
      $region58: #{span_classifier_forward.2} parent=51 // pred_check_branch
        %504 = sbr.rel (%p502) target = $region60
      $region59: #{span_classifier_forward.2} parent=51 // pred_region
        %p505 = scmp.lt.s32.totalorder %s24, 1
        %s506 = scalar_select %p505, %s24, 1
        %p507 = scmp.lt.s32.totalorder %s25, 0
        %s508 = scalar_select %p507, %s25, 0
        %s509 = sadd.s32 %s508, %s506
        %s510 = smul.addr %s509, 8
        %s511 = scalar_lea.vmem %s6, %s510
      $region60: #{span_classifier_forward.2} parent=51 // pred_fallthru
        _
    $region52: #{span_classifier_forward.2} parent=5 // pred_fallthru
      _
  $region6: #{span_classifier_forward.2} parent=0 // loop_footer
    %s17 = sadd.s32 1, %s13
  $region7: #{span_classifier_forward.2} parent=0 // loop_footer_branch
    %12 = sbr.rel target = $region3
  $region8: #{span_classifier_forward.2} parent=0 // loop_exit
    _

// kernel: span_classifier_forward.3
$region0: #{span_classifier_forward.3}
  #allocation0 [shape = 'u32[]', space=smem, size = 0x4, offset = 0x4, fixed_abs, tag = 'smem constant byte address 0x4 - core index']
  #allocation1 [shape = 'u32[144,128]{1,0:T(1,128)}', space=vmem, size = 0x12000, scoped, tag = 'internal scratch']
  %s0 = inlined_call_operand.vmem [shape: f32[2,8,5], index: 0, kind: input, shape index: {}]
  %s1 = inlined_call_operand.vmem [shape: f32[2,5,8], index: 1, kind: input, shape index: {}]
  %s2 = inlined_call_operand.vmem [shape: f32[2,5,8,8], index: 2, kind: output, shape index: {}]
  %s3 = sld [smem:[#allocation0]]
  $region49: #{span_classifier_forward.3} parent=0
    _
  %s5 = ssub.s32 1, %s3
  %s6 = scalar_select 0, %s5, %s3
  loop: start=0, step=1, limit=4
  $region2: #{span_classifier_forward.3} parent=0 // loop_pre_header
    _
  $region3: #{span_classifier_forward.3} parent=0 // loop_header
    %s8 = sphi 0, %s12
    %p9 = scmp.ge.s32.totalorder %s8, 4
    %s15 = sphi 0, %s34
    %s16 = sphi 0, %s30
    %s17 = sphi 0, %s26
    %s18 = sphi 0, %s15
    %s19 = sphi 0, %s16
    %s20 = sphi 0, %s17
    %s21 = sphi 0, %s18
    %s22 = sphi 0, %s19
    %s23 = sphi 0, %s20
    %s39 = sphi 0, %s41
    %s42 = sphi 0, %s39
    %s43 = sphi 0, %s42
    %s59 = sphi 0, %s43
    %s67 = sphi 0, %s69
    %s70 = sphi 0, %s67
    %s71 = sphi 0, %s70
    %s87 = sphi 0, %s71
    %s97 = sphi 0, %s99
    %s100 = sphi 0, %s97
    %s101 = sphi 0, %s100
    %s117 = sphi 0, %s101
  $region4: #{span_classifier_forward.3} parent=0 // loop_header_branch
    %11 = sbr.rel (%p9) target = $region8
  $region5: #{span_classifier_forward.3} parent=0 // loop_body
    %s13 = ssub.s32 %s8, 1
    %s14 = ssub.s32 %s8, 2
    %s24 = sadd.s32 1, %s17
    %p25 = scmp.ge.s32.totalorder %s24, 1
    %s26 = scalar_select %p25, 0, %s24
    %s27 = sadd.s32 1, %s16
    %s28 = scalar_select %p25, %s27, %s16
    %p29 = scmp.ge.s32.totalorder %s28, 1
    %s30 = scalar_select %p29, 0, %s28
    %s31 = sadd.s32 1, %s15
    %s32 = scalar_select %p29, %s31, %s15
    %p33 = scmp.ge.s32.totalorder %s32, 2
    %s34 = scalar_select %p33, 0, %s32
    %s35 = ssub.s32 %s15, %s34
    %s36 = ssub.s32 %s16, %s30
    %s37 = sor.u32 %s35, %s36
    %p38 = scmp.eq.s32.totalorder %s37, 0
    %s40 = sadd.s32 %s39, 1
    %s41 = scalar_select %p38, %s39, %s40
    %p44 = pneg %p38
    %p45 = scmp.eq.s32.totalorder %s8, 1
    %p46 = por %p44, %p45
    %p47 = scmp.ne.s32.totalorder %s39, %s42
    %p48 = scmp.eq.s32.totalorder %s8, 0
    %p49 = por %p47, %p48
    %p50 = scmp.ne.s32.totalorder %s39, %s42
    %p51 = scmp.eq.s32.totalorder %s13, 1
    %p52 = por %p50, %p51
    %p53 = scmp.ne.s32.totalorder %s42, %s43
    %p54 = scmp.eq.s32.totalorder %s13, 0
    %p55 = por %p53, %p54
    %p56 = scmp.ne.s32.totalorder %s42, %s43
    %p57 = scmp.eq.s32.totalorder %s14, 1
    %p58 = por %p56, %p57
    %p60 = scmp.ne.s32.totalorder %s43, %s59
    %p61 = scmp.eq.s32.totalorder %s14, 0
    %p62 = por %p60, %p61
    %s63 = ssub.s32 %s15, %s34
    %s64 = ssub.s32 %s17, %s26
    %s65 = sor.u32 %s63, %s64
    %p66 = scmp.eq.s32.totalorder %s65, 0
    %s68 = sadd.s32 %s67, 1
    %s69 = scalar_select %p66, %s67, %s68
    %p72 = pneg %p66
    %p73 = scmp.eq.s32.totalorder %s8, 1
    %p74 = por %p72, %p73
    %p75 = scmp.ne.s32.totalorder %s67, %s70
    %p76 = scmp.eq.s32.totalorder %s8, 0
    %p77 = por %p75, %p76
    %p78 = scmp.ne.s32.totalorder %s67, %s70
    %p79 = scmp.eq.s32.totalorder %s13, 1
    %p80 = por %p78, %p79
    %p81 = scmp.ne.s32.totalorder %s70, %s71
    %p82 = scmp.eq.s32.totalorder %s13, 0
    %p83 = por %p81, %p82
    %p84 = scmp.ne.s32.totalorder %s70, %s71
    %p85 = scmp.eq.s32.totalorder %s14, 1
    %p86 = por %p84, %p85
    %p88 = scmp.ne.s32.totalorder %s71, %s87
    %p89 = scmp.eq.s32.totalorder %s14, 0
    %p90 = por %p88, %p89
    %s91 = ssub.s32 %s15, %s34
    %s92 = ssub.s32 %s16, %s30
    %s93 = sor.u32 %s91, %s92
    %s94 = ssub.s32 %s17, %s26
    %s95 = sor.u32 %s93, %s94
    %p96 = scmp.eq.s32.totalorder %s95, 0
    %s98 = sadd.s32 %s97, 1
    %s99 = scalar_select %p96, %s97, %s98
    %p102 = pneg %p96
    %p103 = scmp.eq.s32.totalorder %s8, 1
    %p104 = por %p102, %p103
    %p105 = scmp.ne.s32.totalorder %s97, %s100
    %p106 = scmp.eq.s32.totalorder %s8, 0
    %p107 = por %p105, %p106
    %p108 = scmp.ne.s32.totalorder %s97, %s100
    %p109 = scmp.eq.s32.totalorder %s13, 1
    %p110 = por %p108, %p109
    %p111 = scmp.ne.s32.totalorder %s100, %s101
    %p112 = scmp.eq.s32.totalorder %s13, 0
    %p113 = por %p111, %p112
    %p114 = scmp.ne.s32.totalorder %s100, %s101
    %p115 = scmp.eq.s32.totalorder %s14, 1
    %p116 = por %p114, %p115
    %p118 = scmp.ne.s32.totalorder %s101, %s117
    %p119 = scmp.eq.s32.totalorder %s14, 0
    %p120 = por %p118, %p119
    %p121 = scmp.le.s32.totalorder 1, %s8
    %p122 = scmp.lt.s32.totalorder %s8, 3
    %p123 = pnand %p121, %p122
    %p124 = pneg %p123
    // Predicated region
    $region9: #{span_classifier_forward.3} parent=5 // pred_check
      _
    $region10: #{span_classifier_forward.3} parent=5 // pred_check_branch
      %126 = sbr.rel (%p123) target = $region12
    $region11: #{span_classifier_forward.3} parent=5 // pred_region
      %s127 = ssub.s32 %s8, 1
    $region12: #{span_classifier_forward.3} parent=5 // pred_fallthru
      _
    %p128 = scmp.lt.s32.totalorder %s8, 2
    // Predicated region
    $region13: #{span_classifier_forward.3} parent=5 // pred_check
      %p129 = pneg %p128
    $region14: #{span_classifier_forward.3} parent=5 // pred_check_branch
      %131 = sbr.rel (%p129) target = $region16
    $region15: #{span_classifier_forward.3} parent=5 // pred_region
      // Predicated region
      $region17: #{span_classifier_forward.3} parent=15 // pred_check
        %p132 = pneg %p49
      $region18: #{span_classifier_forward.3} parent=15 // pred_check_branch
        %134 = sbr.rel (%p132) target = $region20
      $region19: #{span_classifier_forward.3} parent=15 // pred_region
        %p135 = scmp.lt.s32.totalorder %s15, 1
        %s136 = scalar_select %p135, %s15, 1
        %p137 = scmp.lt.s32.totalorder %s16, 0
        %s138 = scalar_select %p137, %s16, 0
        %s139 = sadd.s32 %s138, %s136
        %s140 = smul.addr %s139, 8
        %s141 = scalar_lea.vmem %s0, %s140
      $region20: #{span_classifier_forward.3} parent=15 // pred_fallthru
        _
      // Predicated region
      $region21: #{span_classifier_forward.3} parent=15 // pred_check
        %p142 = pneg %p77
      $region22: #{span_classifier_forward.3} parent=15 // pred_check_branch
        %144 = sbr.rel (%p142) target = $region24
      $region23: #{span_classifier_forward.3} parent=15 // pred_region
        %p145 = scmp.lt.s32.totalorder %s15, 1
        %s146 = scalar_select %p145, %s15, 1
        %p147 = scmp.lt.s32.totalorder %s17, 0
        %s148 = scalar_select %p147, %s17, 0
        %s149 = sadd.s32 %s148, %s146
        %s150 = smul.addr %s149, 8
        %s151 = scalar_lea.vmem %s1, %s150
      $region24: #{span_classifier_forward.3} parent=15 // pred_fallthru
        _
    $region16: #{span_classifier_forward.3} parent=5 // pred_fallthru
      _
    %p152 = scmp.le.s32.totalorder 1, %s8
    %p153 = scmp.lt.s32.totalorder %s8, 3
    %p154 = pnand %p152, %p153
    %p155 = pneg %p154
    // Predicated region
    $region25: #{span_classifier_forward.3} parent=5 // pred_check
      _
    $region26: #{span_classifier_forward.3} parent=5 // pred_check_branch
      %157 = sbr.rel (%p154) target = $region28
    $region27: #{span_classifier_forward.3} parent=5 // pred_region
      %s158 = ssub.s32 %s8, 1
      %p159 = scmp.lt.s32.totalorder %s18, 1
      %s160 = scalar_select %p159, %s18, 1
      %p161 = scmp.lt.s32.totalorder %s19, 0
      %s162 = scalar_select %p161, %s19, 0
      %s163 = sadd.s32 %s162, %s160
      %s164 = smul.addr %s163, 8
      %s165 = scalar_lea.vmem %s0, %s164
      %p166 = pneg %p55
      %p167 = pneg %p52
      %p168 = scmp.lt.s32.totalorder %s18, 1
      %s169 = scalar_select %p168, %s18, 1
      %p170 = scmp.lt.s32.totalorder %s20, 0
      %s171 = scalar_select %p170, %s20, 0
      %s172 = sadd.s32 %s171, %s169
      %s173 = smul.addr %s172, 8
      %s174 = scalar_lea.vmem %s1, %s173
      %p175 = pneg %p83
      %p176 = pneg %p80
      %p177 = pneg %p113
      %p178 = pneg %p110
      %p179 = scmp.lt.s32.totalorder %s18, 1
      %s180 = scalar_select %p179, %s18, 1
      %p181 = scmp.lt.s32.totalorder %s19, 0
      %s182 = scalar_select %p181, %s19, 0
      %p183 = scmp.lt.s32.totalorder %s20, 0
      %s184 = scalar_select %p183, %s20, 0
      %s185 = sadd.s32 %s184, %s182
      %s186 = smul.addr %s180, 5
      %s187 = sadd.s32 %s185, %s186
      %s188 = smul.addr %s187, 8
      %s189 = scalar_lea.vmem %s2, %s188
      %p190 = scmp.lt.s32.totalorder %s18, 1
      %s191 = scalar_select %p190, %s18, 1
      %p192 = scmp.lt.s32.totalorder %s19, 0
      %s193 = scalar_select %p192, %s19, 0
      %s194 = sadd.s32 %s193, %s191
      %s195 = smul.addr %s194, 8
      %s196 = scalar_lea.vmem %s0, %s195
      %p197 = scmp.lt.s32.totalorder %s18, 1
      %s198 = scalar_select %p197, %s18, 1
      %p199 = scmp.lt.s32.totalorder %s20, 0
      %s200 = scalar_select %p199, %s20, 0
      %s201 = sadd.s32 %s200, %s198
      %s202 = smul.addr %s201, 8
      %s203 = scalar_lea.vmem %s1, %s202
      %p204 = scmp.lt.s32.totalorder %s18, 1
      %s205 = scalar_select %p204, %s18, 1
      %p206 = scmp.lt.s32.totalorder %s19, 0
      %s207 = scalar_select %p206, %s19, 0
      %p208 = scmp.lt.s32.totalorder %s20, 0
      %s209 = scalar_select %p208, %s20, 0
      %s210 = sadd.s32 %s209, %s207
      %s211 = smul.addr %s205, 5
      %s212 = sadd.s32 %s210, %s211
      %s213 = smul.addr %s212, 8
      %s214 = scalar_lea.vmem %s2, %s213
      %s215 = sadd.s32 %s20, 1
      %s216 = smul.u32 %s215, 8
      %s217 = smul.u32 %s19, 8
      %p218 = scmp.le.s32.totalorder %s216, %s217
      // Predicated region
      $region29: #{span_classifier_forward.3} parent=27 // pred_check
        %p219 = pneg %p218
      $region30: #{span_classifier_forward.3} parent=27 // pred_check_branch
        %221 = sbr.rel (%p219) target = $region32
      $region31: #{span_classifier_forward.3} parent=27 // pred_region
        %vm222 = vcmask 64512
        %223 = vst.msk [vmem:[%s214] sm:$0xff] %vm222, 0.0
        %224 = vst.msk [vmem:[%s214 + $0x8] sm:$0xff] %vm222, 0.0
        %225 = vst.msk [vmem:[%s214 + $0x10] sm:$0xff] %vm222, 0.0
        %226 = vst.msk [vmem:[%s214 + $0x18] sm:$0xff] %vm222, 0.0
        %227 = vst.msk [vmem:[%s214 + $0x20] sm:$0xff] %vm222, 0.0
      $region32: #{span_classifier_forward.3} parent=27 // pred_fallthru
        _
      %p228 = scmp.gt.s32.totalorder %s216, %s217
      // Predicated region
      $region33: #{span_classifier_forward.3} parent=27 // pred_check
        %p229 = pneg %p228
      $region34: #{span_classifier_forward.3} parent=27 // pred_check_branch
        %231 = sbr.rel (%p229) target = $region36
      $region35: #{span_classifier_forward.3} parent=27 // pred_region
        %v232 = vld [vmem:[%s196] sm:$0xff]
        %v233 = vld [vmem:[%s203] sm:$0x1f]
        %235 = vrot.lane.b32.xlu0 %v232, 127
        %v236 = vpop.permute.xlu0 %235
        %v238 = vmax.f32 %v232, %v236
        %v240 = vrot.slane %v233, 1
        %v242 = vmax.f32 %v233, %v240
        %243 = vrot.lane.b32.xlu0 %v232, 126
        %v244 = vpop.permute.xlu0 %243
        %v246 = vmax.f32 %v238, %v244
        %v247 = vrot.slane %v233, 2
        %v249 = vmax.f32 %v242, %v247
        %250 = vrot.lane.b32.xlu0 %v232, 125
        %v251 = vpop.permute.xlu0 %250
        %v253 = vmax.f32 %v246, %v251
        %v254 = vrot.slane %v233, 3
        %v256 = vmax.f32 %v249, %v254
        %257 = vrot.lane.b32.xlu0 %v232, 124
        %v258 = vpop.permute.xlu0 %257
        %v260 = vmax.f32 %v253, %v258
        %v261 = vrot.slane %v233, 4
        %v263 = vmax.f32 %v256, %v261
        %265 = vset.pattern.permute.xlu0 0
        %266 = vperm.xlu0 %265, %v260
        %v267 = vpop.permute.xlu0 %266
        %v269 = vsub.f32 %v232, %v267
        %v270 = vmul.f32 %v269, 1.442695
        %v271 = vpow.pop %v270
        %v272 = vlaneseq
        %v273 = vshrl.u32 %v272, 7
        %v274 = vsub.s32 0, %v273
        %v275 = vrot.slane %v263, %v274
        %v276 = vsub.f32 %v233, %v275
        %v277 = vmul.f32 %v276, 1.442695
        %v278 = vpow.pop %v277
        %vm279 = vcmask 39936
        %v281 = vsel %vm279, %v271, 0
        %vm283 = vcmask 1044480
        %v285 = vsel %vm283, %v278, 0
        %287 = vmatprep.subr.mxu0 0.0
        %288 = vmatpush1.msra.mxu0 %v285
        %289 = vmatprep.subr.mxu0 0.0
        %290 = vmatpush1.msra.mxu0 0.0
        %291 = vmatprep.subr.mxu0 0.0
        %292 = vmatpush1.msra.mxu0 0.0
        %293 = vmatprep.subr.mxu0 0.0
        %294 = vmatpush1.msra.mxu0 0.0
        %295 = vmatprep.subr.mxu0 0.0
        %296 = vmatpush1.msra.mxu0 0.0
        %297 = vmatprep.subr.mxu0 0.0
        %298 = vmatpush1.msra.mxu0 0.0
        %299 = vmatprep.subr.mxu0 0.0
        %300 = vmatpush1.msra.mxu0 0.0
        %301 = vmatprep.subr.mxu0 0.0
        %302 = vmatpush1.msra.mxu0 0.0
        %303 = vmatprep.subr.mxu0 0.0
        %304 = vmatpush1.msra.mxu0 0.0
        %305 = vmatprep.subr.mxu0 0.0
        %306 = vmatpush1.msra.mxu0 0.0
        %307 = vmatprep.subr.mxu0 0.0
        %308 = vmatpush1.msra.mxu0 0.0
        %309 = vmatprep.subr.mxu0 0.0
        %310 = vmatpush1.msra.mxu0 0.0
        %311 = vmatprep.subr.mxu0 0.0
        %312 = vmatpush1.msra.mxu0 0.0
        %313 = vmatprep.subr.mxu0 0.0
        %314 = vmatpush1.msra.mxu0 0.0
        %315 = vmatprep.subr.mxu0 0.0
        %316 = vmatpush1.msra.mxu0 0.0
        %317 = vmatprep.subr.mxu0 0.0
        %318 = vmatpush1.msra.mxu0 0.0
        %319 = vmatprep.subr.mxu0 0.0
        %320 = vmatpush1.msra.mxu0 0.0
        %321 = vmatprep.subr.mxu0 0.0
        %322 = vmatpush1.msra.mxu0 0.0
        %323 = vmatprep.subr.mxu0 0.0
        %324 = vmatpush1.msra.mxu0 0.0
        %325 = vmatprep.subr.mxu0 0.0
        %326 = vmatpush1.msra.mxu0 0.0
        %327 = vmatprep.subr.mxu0 0.0
        %328 = vmatpush1.msra.mxu0 0.0
        %329 = vmatprep.subr.mxu0 0.0
        %330 = vmatpush1.msra.mxu0 0.0
        %331 = vmatprep.subr.mxu0 0.0
        %332 = vmatpush1.msra.mxu0 0.0
        %333 = vmatprep.subr.mxu0 0.0
        %334 = vmatpush1.msra.mxu0 0.0
        %335 = vmatprep.subr.mxu0 0.0
        %336 = vmatpush1.msra.mxu0 0.0
        %337 = vmatprep.subr.mxu0 0.0
        %338 = vmatpush1.msra.mxu0 0.0
        %339 = vmatprep.subr.mxu0 0.0
        %340 = vmatpush1.msra.mxu0 0.0
        %341 = vmatprep.subr.mxu0 0.0
        %342 = vmatpush1.msra.mxu0 0.0
        %343 = vmatprep.subr.mxu0 0.0
        %344 = vmatpush1.msra.mxu0 0.0
        %345 = vmatprep.subr.mxu0 0.0
        %346 = vmatpush1.msra.mxu0 0.0
        %347 = vmatprep.subr.mxu0 0.0
        %348 = vmatpush1.msra.mxu0 0.0
        %349 = vmatprep.subr.mxu0 0.0
        %350 = vmatpush1.msra.mxu0 0.0
        %351 = vmatprep.mubr.f32.mxu0 0.0
        %352 = vmatmul.mubr.f32.gmra.mrb[0].mxu0 %v281
        %v353 = vpop.f32.mrb[0].mxu0
        %v354 = vadd.f32 0.0, %v353
        %v355 = vpop.f32.mrb[0].mxu0
        %356 = vdwg.mxu0
        %v357 = vrcp.pop %v354
        %v358 = vmul.f32 %v354, %v357
        %v359 = vsub.f32 2.0, %v358
        %v360 = vmul.f32 %v357, %v359
        %361 = vset.pattern.permute.xlu0 0
        %362 = vperm.xlu0 %361, %v271
        %v363 = vpop.permute.xlu0 %362
        %v365 = vlaneseq
        %v366 = vshrl.u32 %v365, 7
        %v367 = vsub.s32 0, %v366
        %v368 = vrot.slane %v278, %v367
        %v369 = vmul.f32 %v363, %v368
        %v370 = vmul.f32 %v369, %v360
        %vm371 = vcmask 64512
        %372 = vst.msk [vmem:[%s214] sm:$0xff] %vm371, %v370
        %373 = vset.pattern.permute.xlu0 1
        %374 = vperm.xlu0 %373, %v271
        %v375 = vpop.permute.xlu0 %374
        %v377 = vlaneseq
        %v378 = vshrl.u32 %v377, 7
        %v379 = vsub.s32 1, %v378
        %v380 = vrot.slane %v278, %v379
        %v381 = vmul.f32 %v375, %v380
        %v382 = vmul.f32 %v381, %v360
        %s383 = scalar_lea.vmem %s214, 8
        %384 = vst.msk [vmem:[%s383] sm:$0xff] %vm371, %v382
        %385 = vset.pattern.permute.xlu0 2
        %386 = vperm.xlu0 %385, %v271
        %v387 = vpop.permute.xlu0 %386
        %v389 = vlaneseq
        %v390 = vshrl.u32 %v389, 7
        %v391 = vsub.s32 2, %v390
        %v392 = vrot.slane %v278, %v391
        %v393 = vmul.f32 %v387, %v392
        %v394 = vmul.f32 %v393, %v360
        %s395 = scalar_lea.vmem %s214, 16
        %396 = vst.msk [vmem:[%s395] sm:$0xff] %vm371, %v394
        %397 = vset.pattern.permute.xlu0 3
        %398 = vperm.xlu0 %397, %v271
        %v399 = vpop.permute.xlu0 %398
        %v401 = vlaneseq
        %v402 = vshrl.u32 %v401, 7
        %v403 = vsub.s32 3, %v402
        %v404 = vrot.slane %v278, %v403
        %v405 = vmul.f32 %v399, %v404
        %v406 = vmul.f32 %v405, %v360
        %s407 = scalar_lea.vmem %s214, 24
        %408 = vst.msk [vmem:[%s407] sm:$0xff] %vm371, %v406
        %409 = vset.pattern.permute.xlu0 4
        %410 = vperm.xlu0 %409, %v271
        %v411 = vpop.permute.xlu0 %410
        %v413 = vlaneseq
        %v414 = vshrl.u32 %v413, 7
        %v415 = vsub.s32 4, %v414
        %v416 = vrot.slane %v278, %v415
        %v417 = vmul.f32 %v411, %v416
        %v418 = vmul.f32 %v417, %v360
        %s419 = scalar_lea.vmem %s214, 32
        %420 = vst.msk [vmem:[%s419] sm:$0xff] %vm371, %v418
      $region36: #{span_classifier_forward.3} parent=27 // pred_fallthru
        _
      %p421 = scmp.lt.s32.totalorder %s18, 1
      %s422 = scalar_select %p421, %s18, 1
      %p423 = scmp.lt.s32.totalorder %s19, 0
      %s424 = scalar_select %p423, %s19, 0
      %p425 = scmp.lt.s32.totalorder %s20, 0
      %s426 = scalar_select %p425, %s20, 0
      %s427 = sadd.s32 %s426, %s424
      %s428 = smul.addr %s422, 5
      %s429 = sadd.s32 %s427, %s428
      %s430 = smul.addr %s429, 8
      %s431 = scalar_lea.vmem %s2, %s430
      // Predicated region
      $region37: #{span_classifier_forward.3} parent=27 // pred_check
        %p432 = pneg %p110
      $region38: #{span_classifier_forward.3} parent=27 // pred_check_branch
        %434 = sbr.rel (%p432) target = $region40
      $region39: #{span_classifier_forward.3} parent=27 // pred_region
        _
      $region40: #{span_classifier_forward.3} parent=27 // pred_fallthru
        _
    $region28: #{span_classifier_forward.3} parent=5 // pred_fallthru
      _
    %p435 = scmp.le.s32.totalorder 2, %s8
    // Predicated region
    $region41: #{span_classifier_forward.3} parent=5 // pred_check
      %p436 = pneg %p435
    $region42: #{span_classifier_forward.3} parent=5 // pred_check_branch
      %438 = sbr.rel (%p436) target = $region44
    $region43: #{span_classifier_forward.3} parent=5 // pred_region
      %s439 = ssub.s32 %s8, 2
      // Predicated region
      $region45: #{span_classifier_forward.3} parent=43 // pred_check
        %p440 = pneg %p116
      $region46: #{span_classifier_forward.3} parent=43 // pred_check_branch
        %442 = sbr.rel (%p440) target = $region48
      $region47: #{span_classifier_forward.3} parent=43 // pred_region
        %p443 = scmp.lt.s32.totalorder %s21, 1
        %s444 = scalar_select %p443, %s21, 1
        %p445 = scmp.lt.s32.totalorder %s22, 0
        %s446 = scalar_select %p445, %s22, 0
        %p447 = scmp.lt.s32.totalorder %s23, 0
        %s448 = scalar_select %p447, %s23, 0
        %s449 = sadd.s32 %s448, %s446
        %s450 = smul.addr %s444, 5
        %s451 = sadd.s32 %s449, %s450
        %s452 = smul.addr %s451, 8
        %s453 = scalar_lea.vmem %s2, %s452
      $region48: #{span_classifier_forward.3} parent=43 // pred_fallthru
        _
    $region44: #{span_classifier_forward.3} parent=5 // pred_fallthru
      _
  $region6: #{span_classifier_forward.3} parent=0 // loop_footer
    %s12 = sadd.s32 1, %s8
  $region7: #{span_classifier_forward.3} parent=0 // loop_footer_branch
    %7 = sbr.rel target = $region3
  $region8: #{span_classifier_forward.3} parent=0 // loop_exit
    _

</llo_original>
